<compile_context>
chip_gen: v6e
topology: v6e:2x2x1
jax: 0.10.0
libtpu: 0.0.40
codegen_flags: <defaults>
</compile_context>

<pallas_src>
import functools
import math

import jax
import jax.numpy as jnp
from jax.experimental import pallas as pl
from jax.experimental.pallas import tpu as pltpu


def _soft_iou_partials_kernel(p_ref, t_ref, pt_out, p_out, t_out, *,
                              rows, tile_rows):
    """Grid = (batch, row_tiles); each step emits three (8,128) partial sums.

    p_ref / t_ref : (1, tile_rows, 128) input blocks.
    *_out         : (1, 1, 8, 128) per-(batch, tile) partial-sum blocks.
    """
    x = p_ref[0].astype(jnp.float32)          # (TR, 128)
    t = t_ref[0].astype(jnp.float32)          # (TR, 128)
    # sigmoid(x) == 0.5 * tanh(0.5 * x) + 0.5  (single EUP push per element)
    p = 0.5 * jnp.tanh(0.5 * x) + 0.5

    if rows % tile_rows != 0:
        # Ragged last tile exists: mask rows beyond `rows` (the OOB region of
        # the last block holds unspecified data).  Compile-time guarded, so
        # fully divisible shapes pay nothing.
        row0 = pl.program_id(1) * tile_rows
        ridx = jax.lax.broadcasted_iota(jnp.int32, (tile_rows, 128), 0)
        valid = (row0 + ridx) < rows
        p = jnp.where(valid, p, 0.0)
        t = jnp.where(valid, t, 0.0)

    pt = p * t

    # Fold the sublane axis in (8,128)-tile-sized chunks: free reshape (does
    # not cross (8,128) tile boundaries) + pure VPU adds.  The cross-lane
    # reduction happens in the tiny JAX combine step, not here.
    k = tile_rows // 8
    pt_out[0, 0] = jnp.sum(pt.reshape(k, 8, 128), axis=0)
    p_out[0, 0] = jnp.sum(p.reshape(k, 8, 128), axis=0)
    t_out[0, 0] = jnp.sum(t.reshape(k, 8, 128), axis=0)


def soft_iou_loss(pred, target, smooth=0.1):
    """pred, target: (B, C, H, W) float arrays. Returns scalar float32 loss."""
    assert pred.shape == target.shape
    B = pred.shape[0]
    n = math.prod(pred.shape[1:])
    # TODO(synk): handle C*H*W not a multiple of 128 with an in-kernel lane
    # mask instead of asserting.
    assert n % 128 == 0, "C*H*W must be a multiple of 128 for lane alignment"
    rows = n // 128

    # Row-tile size: multiple of the packed-sublane size for the widest input
    # packing (8 for f32, 16 for bf16, 32 for int8/fp8), capped at 2048 rows
    # (1 MiB f32 per input block -> ~4 MiB double-buffered inputs + a few MiB
    # of temporaries; fits scoped-VMEM defaults on every generation incl.
    # v7x's 64 MiB physical VMEM).
    pack = max(max(1, 4 // jnp.dtype(pred.dtype).itemsize),
               max(1, 4 // jnp.dtype(target.dtype).itemsize))
    sub = 8 * pack
    TR_MAX = 2048
    TR = min(TR_MAX, ((rows + sub - 1) // sub) * sub)
    n_tiles = pl.cdiv(rows, TR)

    # Free (contiguous) reshapes — no extra HBM traffic, no padding copies.
    p3 = pred.reshape(B, rows, 128)
    t3 = target.reshape(B, rows, 128)

    kernel = functools.partial(_soft_iou_partials_kernel,
                               rows=rows, tile_rows=TR)

    bytes_in = B * rows * 128 * (jnp.dtype(pred.dtype).itemsize +
                                 jnp.dtype(target.dtype).itemsize)
    bytes_out = 3 * B * n_tiles * 8 * 128 * 4

    pt_part, p_part, t_part = pl.pallas_call(
        kernel,
        out_shape=(
            jax.ShapeDtypeStruct((B, n_tiles, 8, 128), jnp.float32),
            jax.ShapeDtypeStruct((B, n_tiles, 8, 128), jnp.float32),
            jax.ShapeDtypeStruct((B, n_tiles, 8, 128), jnp.float32),
        ),
        grid_spec=pltpu.PrefetchScalarGridSpec(
            num_scalar_prefetch=0,
            grid=(B, n_tiles),
            in_specs=[
                pl.BlockSpec((1, TR, 128), lambda b, r: (b, r, 0)),
                pl.BlockSpec((1, TR, 128), lambda b, r: (b, r, 0)),
            ],
            out_specs=[
                pl.BlockSpec((1, 1, 8, 128), lambda b, r: (b, r, 0, 0)),
                pl.BlockSpec((1, 1, 8, 128), lambda b, r: (b, r, 0, 0)),
                pl.BlockSpec((1, 1, 8, 128), lambda b, r: (b, r, 0, 0)),
            ],
        ),
        compiler_params=pltpu.CompilerParams(
            # Both axes are embarrassingly parallel now (no accumulator), so
            # v7x can split either batch or the row axis across its 2 TCs.
            dimension_semantics=("parallel", "parallel"),
            vmem_limit_bytes=32 * 1024 * 1024,
        ),
        cost_estimate=pl.CostEstimate(
            flops=6 * B * rows * 128,
            transcendentals=B * rows * 128,
            bytes_accessed=bytes_in + bytes_out,
        ),
    )(p3, t3)

    # TODO(synk): if target is a {0,1} mask, pass it as bf16/int8 from the
    # caller to cut HBM bytes (kernel upcasts to f32, so it is drop-in).

    # Tiny JAX combine: cross-lane/tile reduction, IoU ratio, mean over batch.
    inter = jnp.sum(pt_part, axis=(1, 2, 3))
    sum_p = jnp.sum(p_part, axis=(1, 2, 3))
    sum_t = jnp.sum(t_part, axis=(1, 2, 3))
    iou = (inter + smooth) / (sum_p + sum_t - inter + smooth)
    return jnp.mean(1.0 - iou)


def soft_iou_loss_ref(pred, target, smooth=0.1):
    """Pure-JAX reference for correctness checking."""
    p = jax.nn.sigmoid(pred.astype(jnp.float32))
    t = target.astype(jnp.float32)
    inter = jnp.sum(p * t, axis=(1, 2, 3))
    sp = jnp.sum(p, axis=(1, 2, 3))
    st = jnp.sum(t, axis=(1, 2, 3))
    loss = (inter + smooth) / (sp + st - inter + smooth)
    return jnp.mean(1.0 - loss)


if __name__ == "__main__":
    key = jax.random.PRNGKey(0)
    k1, k2 = jax.random.split(key)
    B, C, Hh, Ww = 2, 4, 16, 16
    pred = jax.random.normal(k1, (B, C, Hh, Ww), dtype=jnp.float32)
    target = (jax.random.uniform(k2, (B, C, Hh, Ww)) > 0.5).astype(jnp.float32)

    loss = jax.block_until_ready(soft_iou_loss(pred, target, smooth=0.1))
    ref = jax.block_until_ready(soft_iou_loss_ref(pred, target, smooth=0.1))

    assert jnp.allclose(loss, ref, atol=1e-5, rtol=1e-5), (loss, ref)
    print("KERNEL_OK")
</pallas_src>

<mosaic_0001>
module attributes {stable_mosaic.version = 11 : i64} {
  func.func @_soft_iou_partials_kernel(%arg0: i32, %arg1: i32, %arg2: memref<1x8x128xf32, #tpu.memory_space<vmem>>, %arg3: memref<1x8x128xf32, #tpu.memory_space<vmem>>, %arg4: memref<1x1x8x128xf32, #tpu.memory_space<vmem>>, %arg5: memref<1x1x8x128xf32, #tpu.memory_space<vmem>>, %arg6: memref<1x1x8x128xf32, #tpu.memory_space<vmem>>) attributes {dimension_semantics = [#tpu.dimension_semantics<parallel>, #tpu.dimension_semantics<parallel>], iteration_bounds = array<i64: 2, 1>, scalar_prefetch = 0 : i64, scratch_operands = 0 : i64, tpu.core_type = #tpu.core_type<tc>, window_params = [{transform_indices = @transform_0, window_bounds = array<i64: 1, 8, 128>}, {transform_indices = @transform_1, window_bounds = array<i64: 1, 8, 128>}, {transform_indices = @transform_2, window_bounds = array<i64: 1, 1, 8, 128>}, {transform_indices = @transform_3, window_bounds = array<i64: 1, 1, 8, 128>}, {transform_indices = @transform_4, window_bounds = array<i64: 1, 1, 8, 128>}]} {
    %c0 = arith.constant 0 : index
    %c0_0 = arith.constant 0 : index
    %c0_1 = arith.constant 0 : index
    %0 = vector.load %arg2[%c0, %c0_0, %c0_1] : memref<1x8x128xf32, #tpu.memory_space<vmem>>, vector<1x8x128xf32>
    %1 = vector.shape_cast %0 : vector<1x8x128xf32> to vector<8x128xf32>
    %c0_2 = arith.constant 0 : index
    %c0_3 = arith.constant 0 : index
    %c0_4 = arith.constant 0 : index
    %2 = vector.load %arg3[%c0_2, %c0_3, %c0_4] : memref<1x8x128xf32, #tpu.memory_space<vmem>>, vector<1x8x128xf32>
    %3 = vector.shape_cast %2 : vector<1x8x128xf32> to vector<8x128xf32>
    %cst = arith.constant 5.000000e-01 : f32
    %4 = vector.broadcast %cst : f32 to vector<8x128xf32>
    %5 = arith.mulf %4, %1 : vector<8x128xf32>
    %6 = math.tanh %5 : vector<8x128xf32>
    %cst_5 = arith.constant 5.000000e-01 : f32
    %7 = vector.broadcast %cst_5 : f32 to vector<8x128xf32>
    %8 = arith.mulf %7, %6 : vector<8x128xf32>
    %cst_6 = arith.constant 5.000000e-01 : f32
    %9 = vector.broadcast %cst_6 : f32 to vector<8x128xf32>
    %10 = arith.addf %8, %9 : vector<8x128xf32>
    %11 = arith.mulf %10, %3 : vector<8x128xf32>
    %12 = vector.shape_cast %11 : vector<8x128xf32> to vector<1x8x128xf32>
    %cst_7 = arith.constant dense<0.000000e+00> : vector<8x128xf32>
    %13 = vector.multi_reduction <add>, %12, %cst_7 [0] : vector<1x8x128xf32> to vector<8x128xf32>
    %c0_8 = arith.constant 0 : index
    %c0_9 = arith.constant 0 : index
    %c0_10 = arith.constant 0 : index
    %c0_11 = arith.constant 0 : index
    %14 = vector.load %arg4[%c0_8, %c0_9, %c0_10, %c0_11] : memref<1x1x8x128xf32, #tpu.memory_space<vmem>>, vector<1x1x8x128xf32>
    %15 = vector.shape_cast %14 : vector<1x1x8x128xf32> to vector<8x128xf32>
    %16 = vector.shape_cast %13 : vector<8x128xf32> to vector<1x1x8x128xf32>
    tpu.vector_store %arg4[%c0_8, %c0_9, %c0_10, %c0_11], %16 {strides = array<i32>} : memref<1x1x8x128xf32, #tpu.memory_space<vmem>>, vector<1x1x8x128xf32>,
    %17 = vector.shape_cast %10 : vector<8x128xf32> to vector<1x8x128xf32>
    %cst_12 = arith.constant dense<0.000000e+00> : vector<8x128xf32>
    %18 = vector.multi_reduction <add>, %17, %cst_12 [0] : vector<1x8x128xf32> to vector<8x128xf32>
    %c0_13 = arith.constant 0 : index
    %c0_14 = arith.constant 0 : index
    %c0_15 = arith.constant 0 : index
    %c0_16 = arith.constant 0 : index
    %19 = vector.load %arg5[%c0_13, %c0_14, %c0_15, %c0_16] : memref<1x1x8x128xf32, #tpu.memory_space<vmem>>, vector<1x1x8x128xf32>
    %20 = vector.shape_cast %19 : vector<1x1x8x128xf32> to vector<8x128xf32>
    %21 = vector.shape_cast %18 : vector<8x128xf32> to vector<1x1x8x128xf32>
    tpu.vector_store %arg5[%c0_13, %c0_14, %c0_15, %c0_16], %21 {strides = array<i32>} : memref<1x1x8x128xf32, #tpu.memory_space<vmem>>, vector<1x1x8x128xf32>,
    %22 = vector.shape_cast %3 : vector<8x128xf32> to vector<1x8x128xf32>
    %cst_17 = arith.constant dense<0.000000e+00> : vector<8x128xf32>
    %23 = vector.multi_reduction <add>, %22, %cst_17 [0] : vector<1x8x128xf32> to vector<8x128xf32>
    %c0_18 = arith.constant 0 : index
    %c0_19 = arith.constant 0 : index
    %c0_20 = arith.constant 0 : index
    %c0_21 = arith.constant 0 : index
    %24 = vector.load %arg6[%c0_18, %c0_19, %c0_20, %c0_21] : memref<1x1x8x128xf32, #tpu.memory_space<vmem>>, vector<1x1x8x128xf32>
    %25 = vector.shape_cast %24 : vector<1x1x8x128xf32> to vector<8x128xf32>
    %26 = vector.shape_cast %23 : vector<8x128xf32> to vector<1x1x8x128xf32>
    tpu.vector_store %arg6[%c0_18, %c0_19, %c0_20, %c0_21], %26 {strides = array<i32>} : memref<1x1x8x128xf32, #tpu.memory_space<vmem>>, vector<1x1x8x128xf32>,
    return
  }
  func.func @transform_0(%arg0: i32, %arg1: i32) -> (i32, i32, i32) {
    %c0_i32 = arith.constant 0 : i32
    %c0_i32_0 = arith.constant 0 : i32
    return %arg0, %arg1, %c0_i32 : i32, i32, i32
  }
  func.func @transform_1(%arg0: i32, %arg1: i32) -> (i32, i32, i32) {
    %c0_i32 = arith.constant 0 : i32
    %c0_i32_0 = arith.constant 0 : i32
    return %arg0, %arg1, %c0_i32 : i32, i32, i32
  }
  func.func @transform_2(%arg0: i32, %arg1: i32) -> (i32, i32, i32, i32) {
    %c0_i32 = arith.constant 0 : i32
    %c0_i32_0 = arith.constant 0 : i32
    %c0_i32_1 = arith.constant 0 : i32
    return %arg0, %arg1, %c0_i32, %c0_i32_0 : i32, i32, i32, i32
  }
  func.func @transform_3(%arg0: i32, %arg1: i32) -> (i32, i32, i32, i32) {
    %c0_i32 = arith.constant 0 : i32
    %c0_i32_0 = arith.constant 0 : i32
    %c0_i32_1 = arith.constant 0 : i32
    return %arg0, %arg1, %c0_i32, %c0_i32_0 : i32, i32, i32, i32
  }
  func.func @transform_4(%arg0: i32, %arg1: i32) -> (i32, i32, i32, i32) {
    %c0_i32 = arith.constant 0 : i32
    %c0_i32_0 = arith.constant 0 : i32
    %c0_i32_1 = arith.constant 0 : i32
    return %arg0, %arg1, %c0_i32, %c0_i32_0 : i32, i32, i32, i32
  }
}

</mosaic_0001>

<llo_original>
// kernel: tpu_custom_call.1
$region0: #{tpu_custom_call.1}
  #allocation0 [shape = 'u32[]', space=smem, size = 0x4, offset = 0x4, fixed_abs, tag = 'smem constant byte address 0x4 - core index']
  #allocation1 [shape = 'u32[144,128]{1,0:T(1,128)}', space=vmem, size = 0x12000, scoped, tag = 'internal scratch']
  %s0 = inlined_call_operand.hbm [shape: f32[2,8,128], index: 0, kind: input, shape index: {}]
  %s1 = inlined_call_operand.hbm [shape: f32[2,8,128], index: 1, kind: input, shape index: {}]
  %s2 = inlined_call_operand.hbm [shape: f32[2,1,8,128], index: 2, kind: output, shape index: {0}]
  %s3 = inlined_call_operand.hbm [shape: f32[2,1,8,128], index: 3, kind: output, shape index: {1}]
  %s4 = inlined_call_operand.hbm [shape: f32[2,1,8,128], index: 4, kind: output, shape index: {2}]
  %5 = xla_tuple %s2, %s3, %s4
  %s6 = sld [smem:[#allocation0]]
  $region65: #{tpu_custom_call.1} parent=0
    _
  %s8 = ssub.s32 1, %s6
  %s9 = scalar_select 0, %s8, %s6
  $region1: #{tpu_custom_call.1} parent=0
    #allocation2 [shape = 'u8[8192]{0}', space=vmem, size = 0x2000, scoped, tag = 'input window, operand 0']
    #allocation3 [shape = 's32[2]{0}', space=sflag, size = 0x8, scoped, tag = 'scoped memory for tpu_custom_call.1']
    #allocation4 [shape = 's32[2]{0}', space=sflag, size = 0x8, scoped, tag = 'scoped memory for tpu_custom_call.1']
    #allocation5 [shape = 'u8[8192]{0}', space=vmem, size = 0x2000, scoped, tag = 'input window, operand 1']
    #allocation6 [shape = 's32[2]{0}', space=sflag, size = 0x8, scoped, tag = 'scoped memory for tpu_custom_call.1']
    #allocation7 [shape = 'u8[8192]{0}', space=vmem, size = 0x2000, scoped, tag = 'output window, operand 0']
    #allocation8 [shape = 'u8[8192]{0}', space=vmem, size = 0x2000, scoped, tag = 'output window, operand 1']
    #allocation9 [shape = 's32[2]{0}', space=sflag, size = 0x8, scoped, tag = 'scoped memory for tpu_custom_call.1']
    #allocation10 [shape = 'u8[8192]{0}', space=vmem, size = 0x2000, scoped, tag = 'output window, operand 2']
    %10 = vsyncpa [#allocation3], 0
    %s11 = scalar_lea.sflag [#allocation3], 1
    %12 = vsyncpa %s11, 0
    %13 = vsyncpa [#allocation6], 0
    %s14 = scalar_lea.sflag [#allocation6], 1
    %15 = vsyncpa %s14, 0
    %16 = vsyncpa [#allocation4], 0
    %s17 = scalar_lea.sflag [#allocation4], 1
    %18 = vsyncpa %s17, 0
    %19 = vsyncpa [#allocation9], 0
    %s20 = scalar_lea.sflag [#allocation9], 1
    %21 = vsyncpa %s20, 0
    loop: start=0, step=1, limit=4
    $region2: #{tpu_custom_call.1} parent=1 // loop_pre_header
      _
    $region3: #{tpu_custom_call.1} parent=1 // loop_header
      %s23 = sphi 0, %s27
      %p24 = scmp.ge.s32.totalorder %s23, 4
      %s30 = sphi 0, %s42
      %s31 = sphi 0, %s38
      %s32 = sphi 0, %s30
      %s33 = sphi 0, %s31
      %s34 = sphi 0, %s32
      %s35 = sphi 0, %s33
      %s47 = sphi 0, %s49
      %s50 = sphi 0, %s47
      %s51 = sphi 0, %s50
      %s67 = sphi 0, %s51
      %s75 = sphi 0, %s77
      %s78 = sphi 0, %s75
      %s79 = sphi 0, %s78
      %s95 = sphi 0, %s79
      %s103 = sphi 0, %s105
      %s106 = sphi 0, %s103
      %s107 = sphi 0, %s106
      %s123 = sphi 0, %s107
      %s131 = sphi 0, %s133
      %s134 = sphi 0, %s131
      %s135 = sphi 0, %s134
      %s151 = sphi 0, %s135
      %s159 = sphi 0, %s161
      %s162 = sphi 0, %s159
      %s163 = sphi 0, %s162
      %s179 = sphi 0, %s163
    $region4: #{tpu_custom_call.1} parent=1 // loop_header_branch
      %26 = sbr.rel (%p24) target = $region8
    $region5: #{tpu_custom_call.1} parent=1 // loop_body
      %s28 = ssub.s32 %s23, 1
      %s29 = ssub.s32 %s23, 2
      %s36 = sadd.s32 1, %s31
      %p37 = scmp.ge.s32.totalorder %s36, 1
      %s38 = scalar_select %p37, 0, %s36
      %s39 = sadd.s32 1, %s30
      %s40 = scalar_select %p37, %s39, %s30
      %p41 = scmp.ge.s32.totalorder %s40, 2
      %s42 = scalar_select %p41, 0, %s40
      %s43 = ssub.s32 %s30, %s42
      %s44 = ssub.s32 %s31, %s38
      %s45 = sor.u32 %s43, %s44
      %p46 = scmp.eq.s32.totalorder %s45, 0
      %s48 = sadd.s32 %s47, 1
      %s49 = scalar_select %p46, %s47, %s48
      %p52 = pneg %p46
      %p53 = scmp.eq.s32.totalorder %s23, 1
      %p54 = por %p52, %p53
      %p55 = scmp.ne.s32.totalorder %s47, %s50
      %p56 = scmp.eq.s32.totalorder %s23, 0
      %p57 = por %p55, %p56
      %p58 = scmp.ne.s32.totalorder %s47, %s50
      %p59 = scmp.eq.s32.totalorder %s28, 1
      %p60 = por %p58, %p59
      %p61 = scmp.ne.s32.totalorder %s50, %s51
      %p62 = scmp.eq.s32.totalorder %s28, 0
      %p63 = por %p61, %p62
      %p64 = scmp.ne.s32.totalorder %s50, %s51
      %p65 = scmp.eq.s32.totalorder %s29, 1
      %p66 = por %p64, %p65
      %p68 = scmp.ne.s32.totalorder %s51, %s67
      %p69 = scmp.eq.s32.totalorder %s29, 0
      %p70 = por %p68, %p69
      %s71 = ssub.s32 %s30, %s42
      %s72 = ssub.s32 %s31, %s38
      %s73 = sor.u32 %s71, %s72
      %p74 = scmp.eq.s32.totalorder %s73, 0
      %s76 = sadd.s32 %s75, 1
      %s77 = scalar_select %p74, %s75, %s76
      %p80 = pneg %p74
      %p81 = scmp.eq.s32.totalorder %s23, 1
      %p82 = por %p80, %p81
      %p83 = scmp.ne.s32.totalorder %s75, %s78
      %p84 = scmp.eq.s32.totalorder %s23, 0
      %p85 = por %p83, %p84
      %p86 = scmp.ne.s32.totalorder %s75, %s78
      %p87 = scmp.eq.s32.totalorder %s28, 1
      %p88 = por %p86, %p87
      %p89 = scmp.ne.s32.totalorder %s78, %s79
      %p90 = scmp.eq.s32.totalorder %s28, 0
      %p91 = por %p89, %p90
      %p92 = scmp.ne.s32.totalorder %s78, %s79
      %p93 = scmp.eq.s32.totalorder %s29, 1
      %p94 = por %p92, %p93
      %p96 = scmp.ne.s32.totalorder %s79, %s95
      %p97 = scmp.eq.s32.totalorder %s29, 0
      %p98 = por %p96, %p97
      %s99 = ssub.s32 %s30, %s42
      %s100 = ssub.s32 %s31, %s38
      %s101 = sor.u32 %s99, %s100
      %p102 = scmp.eq.s32.totalorder %s101, 0
      %s104 = sadd.s32 %s103, 1
      %s105 = scalar_select %p102, %s103, %s104
      %p108 = pneg %p102
      %p109 = scmp.eq.s32.totalorder %s23, 1
      %p110 = por %p108, %p109
      %p111 = scmp.ne.s32.totalorder %s103, %s106
      %p112 = scmp.eq.s32.totalorder %s23, 0
      %p113 = por %p111, %p112
      %p114 = scmp.ne.s32.totalorder %s103, %s106
      %p115 = scmp.eq.s32.totalorder %s28, 1
      %p116 = por %p114, %p115
      %p117 = scmp.ne.s32.totalorder %s106, %s107
      %p118 = scmp.eq.s32.totalorder %s28, 0
      %p119 = por %p117, %p118
      %p120 = scmp.ne.s32.totalorder %s106, %s107
      %p121 = scmp.eq.s32.totalorder %s29, 1
      %p122 = por %p120, %p121
      %p124 = scmp.ne.s32.totalorder %s107, %s123
      %p125 = scmp.eq.s32.totalorder %s29, 0
      %p126 = por %p124, %p125
      %s127 = ssub.s32 %s30, %s42
      %s128 = ssub.s32 %s31, %s38
      %s129 = sor.u32 %s127, %s128
      %p130 = scmp.eq.s32.totalorder %s129, 0
      %s132 = sadd.s32 %s131, 1
      %s133 = scalar_select %p130, %s131, %s132
      %p136 = pneg %p130
      %p137 = scmp.eq.s32.totalorder %s23, 1
      %p138 = por %p136, %p137
      %p139 = scmp.ne.s32.totalorder %s131, %s134
      %p140 = scmp.eq.s32.totalorder %s23, 0
      %p141 = por %p139, %p140
      %p142 = scmp.ne.s32.totalorder %s131, %s134
      %p143 = scmp.eq.s32.totalorder %s28, 1
      %p144 = por %p142, %p143
      %p145 = scmp.ne.s32.totalorder %s134, %s135
      %p146 = scmp.eq.s32.totalorder %s28, 0
      %p147 = por %p145, %p146
      %p148 = scmp.ne.s32.totalorder %s134, %s135
      %p149 = scmp.eq.s32.totalorder %s29, 1
      %p150 = por %p148, %p149
      %p152 = scmp.ne.s32.totalorder %s135, %s151
      %p153 = scmp.eq.s32.totalorder %s29, 0
      %p154 = por %p152, %p153
      %s155 = ssub.s32 %s30, %s42
      %s156 = ssub.s32 %s31, %s38
      %s157 = sor.u32 %s155, %s156
      %p158 = scmp.eq.s32.totalorder %s157, 0
      %s160 = sadd.s32 %s159, 1
      %s161 = scalar_select %p158, %s159, %s160
      %p164 = pneg %p158
      %p165 = scmp.eq.s32.totalorder %s23, 1
      %p166 = por %p164, %p165
      %p167 = scmp.ne.s32.totalorder %s159, %s162
      %p168 = scmp.eq.s32.totalorder %s23, 0
      %p169 = por %p167, %p168
      %p170 = scmp.ne.s32.totalorder %s159, %s162
      %p171 = scmp.eq.s32.totalorder %s28, 1
      %p172 = por %p170, %p171
      %p173 = scmp.ne.s32.totalorder %s162, %s163
      %p174 = scmp.eq.s32.totalorder %s28, 0
      %p175 = por %p173, %p174
      %p176 = scmp.ne.s32.totalorder %s162, %s163
      %p177 = scmp.eq.s32.totalorder %s29, 1
      %p178 = por %p176, %p177
      %p180 = scmp.ne.s32.totalorder %s163, %s179
      %p181 = scmp.eq.s32.totalorder %s29, 0
      %p182 = por %p180, %p181
      %p183 = scmp.le.s32.totalorder 1, %s23
      %p184 = scmp.lt.s32.totalorder %s23, 3
      %p185 = pnand %p183, %p184
      %p186 = pneg %p185
      // Predicated region
      $region9: #{tpu_custom_call.1} parent=5 // pred_check
        _
      $region10: #{tpu_custom_call.1} parent=5 // pred_check_branch
        %188 = sbr.rel (%p185) target = $region12
      $region11: #{tpu_custom_call.1} parent=5 // pred_region
        %s189 = ssub.s32 %s23, 1
      $region12: #{tpu_custom_call.1} parent=5 // pred_fallthru
        _
      %p190 = scmp.lt.s32.totalorder %s23, 2
      // Predicated region
      $region13: #{tpu_custom_call.1} parent=5 // pred_check
        %p191 = pneg %p190
      $region14: #{tpu_custom_call.1} parent=5 // pred_check_branch
        %193 = sbr.rel (%p191) target = $region16
      $region15: #{tpu_custom_call.1} parent=5 // pred_region
        // Predicated region
        $region17: #{tpu_custom_call.1} parent=15 // pred_check
          %p194 = pneg %p57
        $region18: #{tpu_custom_call.1} parent=15 // pred_check_branch
          %196 = sbr.rel (%p194) target = $region20
        $region19: #{tpu_custom_call.1} parent=15 // pred_region
          %s197 = sand.u32 %s47, 1
          %s198 = scalar_lea.sflag [#allocation3], %s197
          %s199 = sand.u32 %s47, 1
          %s200 = smul.addr %s199, 8
          %s201 = scalar_lea.vmem [#allocation2], %s200
          %s203 = ssub.s32 128, 128
          %204 = vsyncadd %s198, %s203
          %s205 = sadd.s32 %s31, %s30
          %s206 = smul.addr %s205, 128
          %s207 = scalar_lea.hbm %s0, %s206
          %s209 = sshll.u32 %s201, 4
          %s210 = int_to_ptr.vmem [resolvable:$true] %s209
          %212 = dma.hbm_to_vmem [thread:$0]  %s207, 128, %s210, %s198
        $region20: #{tpu_custom_call.1} parent=15 // pred_fallthru
          _
        // Predicated region
        $region21: #{tpu_custom_call.1} parent=15 // pred_check
          %p213 = pneg %p85
        $region22: #{tpu_custom_call.1} parent=15 // pred_check_branch
          %215 = sbr.rel (%p213) target = $region24
        $region23: #{tpu_custom_call.1} parent=15 // pred_region
          %s216 = sand.u32 %s75, 1
          %s217 = scalar_lea.sflag [#allocation6], %s216
          %s218 = sand.u32 %s75, 1
          %s219 = smul.addr %s218, 8
          %s220 = scalar_lea.vmem [#allocation5], %s219
          %s222 = ssub.s32 128, 128
          %223 = vsyncadd %s217, %s222
          %s224 = sadd.s32 %s31, %s30
          %s225 = smul.addr %s224, 128
          %s226 = scalar_lea.hbm %s1, %s225
          %s228 = sshll.u32 %s220, 4
          %s229 = int_to_ptr.vmem [resolvable:$true] %s228
          %231 = dma.hbm_to_vmem [thread:$0]  %s226, 128, %s229, %s217
        $region24: #{tpu_custom_call.1} parent=15 // pred_fallthru
          _
      $region16: #{tpu_custom_call.1} parent=5 // pred_fallthru
        _
      %p232 = scmp.le.s32.totalorder 1, %s23
      %p233 = scmp.lt.s32.totalorder %s23, 3
      %p234 = pnand %p232, %p233
      %p235 = pneg %p234
      // Predicated region
      $region25: #{tpu_custom_call.1} parent=5 // pred_check
        _
      $region26: #{tpu_custom_call.1} parent=5 // pred_check_branch
        %237 = sbr.rel (%p234) target = $region28
      $region27: #{tpu_custom_call.1} parent=5 // pred_region
        %s238 = ssub.s32 %s23, 1
        %s239 = sand.u32 %s50, 1
        %s240 = scalar_lea.sflag [#allocation3], %s239
        %s241 = sand.u32 %s50, 1
        %s242 = smul.addr %s241, 8
        %s243 = scalar_lea.vmem [#allocation2], %s242
        // Predicated region
        $region29: #{tpu_custom_call.1} parent=27 // pred_check
          %p244 = pneg %p63
        $region30: #{tpu_custom_call.1} parent=27 // pred_check_branch
          %246 = sbr.rel (%p244) target = $region32
        $region31: #{tpu_custom_call.1} parent=27 // pred_region
          %247 = dma.done %s240, 128
        $region32: #{tpu_custom_call.1} parent=27 // pred_fallthru
          _
        %s248 = sand.u32 %s78, 1
        %s249 = scalar_lea.sflag [#allocation6], %s248
        %s250 = sand.u32 %s78, 1
        %s251 = smul.addr %s250, 8
        %s252 = scalar_lea.vmem [#allocation5], %s251
        // Predicated region
        $region33: #{tpu_custom_call.1} parent=27 // pred_check
          %p253 = pneg %p91
        $region34: #{tpu_custom_call.1} parent=27 // pred_check_branch
          %255 = sbr.rel (%p253) target = $region36
        $region35: #{tpu_custom_call.1} parent=27 // pred_region
          %256 = dma.done %s249, 128
        $region36: #{tpu_custom_call.1} parent=27 // pred_fallthru
          _
        %s257 = sand.u32 %s50, 1
        %s258 = scalar_lea.sflag [#allocation3], %s257
        %s259 = sand.u32 %s50, 1
        %s260 = smul.addr %s259, 8
        %s261 = scalar_lea.vmem [#allocation2], %s260
        %p262 = pneg %p63
        %p263 = pneg %p60
        %s264 = sand.u32 %s78, 1
        %s265 = scalar_lea.sflag [#allocation6], %s264
        %s266 = sand.u32 %s78, 1
        %s267 = smul.addr %s266, 8
        %s268 = scalar_lea.vmem [#allocation5], %s267
        %p269 = pneg %p91
        %p270 = pneg %p88
        %p271 = pneg %p119
        %p272 = pneg %p116
        %s273 = sand.u32 %s106, 1
        %s274 = scalar_lea.sflag [#allocation4], %s273
        %s275 = sand.u32 %s106, 1
        %s276 = smul.addr %s275, 8
        %s277 = scalar_lea.vmem [#allocation7], %s276
        %p278 = pneg %p147
        %p279 = pneg %p144
        %s280 = sand.u32 %s28, 1
        %s281 = scalar_lea.sflag [#allocation9], %s280
        %s282 = sand.u32 %s134, 1
        %s283 = smul.addr %s282, 8
        %s284 = scalar_lea.vmem [#allocation8], %s283
        %p285 = pneg %p175
        %p286 = pneg %p172
        %s287 = sand.u32 %s28, 1
        %s288 = scalar_lea.sflag [#allocation9], %s287
        %s289 = sand.u32 %s162, 1
        %s290 = smul.addr %s289, 8
        %s291 = scalar_lea.vmem [#allocation10], %s290
        %v292 = vld [vmem:[%s243] sm:$0xff]
        %v293 = vld [vmem:[%s252] sm:$0xff]
        %v294 = vmul.f32 %v292, 0.5
        %v295 = vtanh.pop %v294
        %v296 = vmul.f32 %v295, 0.5
        %v297 = vadd.f32 %v296, 0.5
        %v298 = vmul.f32 %v297, %v293
        %v299 = vadd.f32 %v298, 0.0
        %300 = vst [vmem:[%s277] sm:$0xff] %v299
        %v301 = vadd.f32 %v297, 0.0
        %302 = vst [vmem:[%s284] sm:$0xff] %v301
        %v303 = vadd.f32 %v293, 0.0
        %304 = vst [vmem:[%s291] sm:$0xff] %v303
        %s305 = sand.u32 %s106, 1
        %s306 = scalar_lea.sflag [#allocation4], %s305
        %s307 = sand.u32 %s106, 1
        %s308 = smul.addr %s307, 8
        %s309 = scalar_lea.vmem [#allocation7], %s308
        %s310 = sand.u32 %s28, 1
        %s311 = scalar_lea.sflag [#allocation9], %s310
        %s312 = sand.u32 %s134, 1
        %s313 = smul.addr %s312, 8
        %s314 = scalar_lea.vmem [#allocation8], %s313
        %s315 = sand.u32 %s28, 1
        %s316 = scalar_lea.sflag [#allocation9], %s315
        %s317 = sand.u32 %s162, 1
        %s318 = smul.addr %s317, 8
        %s319 = scalar_lea.vmem [#allocation10], %s318
        // Predicated region
        $region37: #{tpu_custom_call.1} parent=27 // pred_check
          %p320 = pneg %p116
        $region38: #{tpu_custom_call.1} parent=27 // pred_check_branch
          %322 = sbr.rel (%p320) target = $region40
        $region39: #{tpu_custom_call.1} parent=27 // pred_region
          %s324 = ssub.s32 128, 128
          %325 = vsyncadd %s306, %s324
          %s326 = sadd.s32 %s33, %s32
          %s327 = smul.addr %s326, 128
          %s328 = scalar_lea.hbm %s2, %s327
          %s330 = sshll.u32 %s309, 4
          %s331 = int_to_ptr.vmem [resolvable:$true] %s330
          %333 = dma.vmem_to_hbm [thread:$0]  %s331, 128, %s328, %s306
        $region40: #{tpu_custom_call.1} parent=27 // pred_fallthru
          _
        // Predicated region
        $region41: #{tpu_custom_call.1} parent=27 // pred_check
          %p334 = pneg %p144
        $region42: #{tpu_custom_call.1} parent=27 // pred_check_branch
          %336 = sbr.rel (%p334) target = $region44
        $region43: #{tpu_custom_call.1} parent=27 // pred_region
          %s338 = ssub.s32 128, 128
          %339 = vsyncadd %s311, %s338
          %s340 = sadd.s32 %s33, %s32
          %s341 = smul.addr %s340, 128
          %s342 = scalar_lea.hbm %s3, %s341
          %s344 = sshll.u32 %s314, 4
          %s345 = int_to_ptr.vmem [resolvable:$true] %s344
          %347 = dma.vmem_to_hbm [thread:$0]  %s345, 128, %s342, %s311
        $region44: #{tpu_custom_call.1} parent=27 // pred_fallthru
          _
        // Predicated region
        $region45: #{tpu_custom_call.1} parent=27 // pred_check
          %p348 = pneg %p172
        $region46: #{tpu_custom_call.1} parent=27 // pred_check_branch
          %350 = sbr.rel (%p348) target = $region48
        $region47: #{tpu_custom_call.1} parent=27 // pred_region
          %s352 = ssub.s32 128, 128
          %353 = vsyncadd %s316, %s352
          %s354 = sadd.s32 %s33, %s32
          %s355 = smul.addr %s354, 128
          %s356 = scalar_lea.hbm %s4, %s355
          %s358 = sshll.u32 %s319, 4
          %s359 = int_to_ptr.vmem [resolvable:$true] %s358
          %361 = dma.vmem_to_hbm [thread:$0]  %s359, 128, %s356, %s316
        $region48: #{tpu_custom_call.1} parent=27 // pred_fallthru
          _
      $region28: #{tpu_custom_call.1} parent=5 // pred_fallthru
        _
      %p362 = scmp.le.s32.totalorder 2, %s23
      // Predicated region
      $region49: #{tpu_custom_call.1} parent=5 // pred_check
        %p363 = pneg %p362
      $region50: #{tpu_custom_call.1} parent=5 // pred_check_branch
        %365 = sbr.rel (%p363) target = $region52
      $region51: #{tpu_custom_call.1} parent=5 // pred_region
        %s366 = ssub.s32 %s23, 2
        // Predicated region
        $region53: #{tpu_custom_call.1} parent=51 // pred_check
          %p367 = pneg %p122
        $region54: #{tpu_custom_call.1} parent=51 // pred_check_branch
          %369 = sbr.rel (%p367) target = $region56
        $region55: #{tpu_custom_call.1} parent=51 // pred_region
          %s370 = sand.u32 %s107, 1
          %s371 = scalar_lea.sflag [#allocation4], %s370
          %s372 = sand.u32 %s107, 1
          %s373 = smul.addr %s372, 8
          %s374 = scalar_lea.vmem [#allocation7], %s373
          %375 = dma.done %s371, 128
        $region56: #{tpu_custom_call.1} parent=51 // pred_fallthru
          _
        // Predicated region
        $region57: #{tpu_custom_call.1} parent=51 // pred_check
          %p376 = pneg %p150
        $region58: #{tpu_custom_call.1} parent=51 // pred_check_branch
          %378 = sbr.rel (%p376) target = $region60
        $region59: #{tpu_custom_call.1} parent=51 // pred_region
          %s379 = sand.u32 %s29, 1
          %s380 = scalar_lea.sflag [#allocation9], %s379
          %s381 = sand.u32 %s135, 1
          %s382 = smul.addr %s381, 8
          %s383 = scalar_lea.vmem [#allocation8], %s382
          %384 = dma.done %s380, 128
        $region60: #{tpu_custom_call.1} parent=51 // pred_fallthru
          _
        // Predicated region
        $region61: #{tpu_custom_call.1} parent=51 // pred_check
          %p385 = pneg %p178
        $region62: #{tpu_custom_call.1} parent=51 // pred_check_branch
          %387 = sbr.rel (%p385) target = $region64
        $region63: #{tpu_custom_call.1} parent=51 // pred_region
          %s388 = sand.u32 %s29, 1
          %s389 = scalar_lea.sflag [#allocation9], %s388
          %s390 = sand.u32 %s163, 1
          %s391 = smul.addr %s390, 8
          %s392 = scalar_lea.vmem [#allocation10], %s391
          %393 = dma.done %s389, 128
        $region64: #{tpu_custom_call.1} parent=51 // pred_fallthru
          _
      $region52: #{tpu_custom_call.1} parent=5 // pred_fallthru
        _
    $region6: #{tpu_custom_call.1} parent=1 // loop_footer
      %s27 = sadd.s32 1, %s23
    $region7: #{tpu_custom_call.1} parent=1 // loop_footer_branch
      %22 = sbr.rel target = $region3
    $region8: #{tpu_custom_call.1} parent=1 // loop_exit
      _
    %394 = vsyncpa [#allocation3], 1
    %s395 = scalar_lea.sflag [#allocation3], 1
    %396 = vsyncpa %s395, 1
    %397 = vsyncpa [#allocation6], 1
    %s398 = scalar_lea.sflag [#allocation6], 1
    %399 = vsyncpa %s398, 1
    %400 = vsyncpa [#allocation4], 1
    %s401 = scalar_lea.sflag [#allocation4], 1
    %402 = vsyncpa %s401, 1
    %403 = vsyncpa [#allocation9], 1
    %s404 = scalar_lea.sflag [#allocation9], 1
    %405 = vsyncpa %s404, 1

</llo_original>
